<compile_context>
chip_gen: v7x
topology: tpu7x:2x2x1
jax: 0.10.0
libtpu: 0.0.40
codegen_flags: <defaults>
</compile_context>

<pallas_src>
import jax
import jax.numpy as jnp
from jax.experimental import pallas as pl
from jax.experimental.pallas import tpu as pltpu


# ----------------------------------------------------------------------------
# Kernel
# ----------------------------------------------------------------------------
def pointnet_kernel(x_ref,
                    w1_ref, b1_ref,
                    w2_ref, b2_ref,
                    w3_ref, b3_ref,
                    w4_ref, b4_ref,
                    w5_ref, b5_ref,
                    out_ref):
    # x_ref block: (BB*N, C_in) rows of points for BB whole batch elements.
    # out_ref block: (1, BB, C_out_pad).
    R, C_in = x_ref.shape
    _, BB, C_out = out_ref.shape
    N = R // BB

    h = x_ref[...]                                   # (R, C_in) f32

    # ---- layer 1: contraction depth is tiny (3) -> VPU broadcast FMAs,
    #      keeping the MXU-push slot free for the real matmuls below.
    if C_in <= 8:
        w1 = w1_ref[...]                             # (C_in, C1_pad) f32
        y = jnp.broadcast_to(b1_ref[...], (R, w1.shape[1]))
        for k in range(C_in):                        # static unroll (3 iters)
            y = y + h[:, k:k + 1] * w1[k:k + 1, :]
    else:
        y = jnp.dot(h.astype(w1_ref.dtype), w1_ref[...],
                    preferred_element_type=jnp.float32) + b1_ref[...]
    h = jnp.maximum(y, 0.0)                          # (R, 128) f32

    # ---- layers 2..5: lane-padded bf16 MXU matmuls, f32 accumulation,
    #      bias + ReLU in f32 (v5e has no bf16 VPU/EUP).
    def linear_relu(h, w_ref, b_ref):
        y = jnp.dot(h.astype(w_ref.dtype), w_ref[...],
                    preferred_element_type=jnp.float32)
        return jnp.maximum(y + b_ref[...], 0.0)

    h = linear_relu(h, w2_ref, b2_ref)
    h = linear_relu(h, w3_ref, b3_ref)
    h = linear_relu(h, w4_ref, b4_ref)
    h = linear_relu(h, w5_ref, b5_ref)               # (R, C_out) f32

    # ---- MaxPool1d(n_points): one reshape-based reduction + one lane-dense
    #      whole-block store (no per-row masked vst.msk stores).
    out_ref[0] = jnp.max(h.reshape(BB, N, C_out), axis=1)


# ----------------------------------------------------------------------------
# One-time parameter preparation (hoisted out of the forward hot path)
# ----------------------------------------------------------------------------
def _pad128(c):
    return ((c + 127) // 128) * 128


def prepare_params(params, use_bf16=True):
    """Zero-pad channel dims to 128 lanes and cast MXU-layer weights to bf16.

    Padded columns stay exactly 0 through (zero weight, zero bias, ReLU) and
    are sliced off after the pool, so the math is unchanged.  Layer 1 keeps its
    raw tiny C_in (VPU FMA path) and stays f32.  Call ONCE at init time.
    """
    mm_dtype = jnp.bfloat16 if use_bf16 else jnp.float32
    padded = []
    prev_pad = params[0][0].shape[0]                 # raw C_in for layer 1
    for li, (w, b) in enumerate(params):
        c_in, c_out = w.shape
        c_out_p = _pad128(c_out)
        wp = jnp.zeros((prev_pad, c_out_p), jnp.float32).at[:c_in, :c_out].set(w)
        bp = jnp.zeros((1, c_out_p), jnp.float32).at[:, :c_out].set(b)
        if li > 0:
            wp = wp.astype(mm_dtype)
        padded.append((wp, bp))
        prev_pad = c_out_p
    c_last = params[-1][0].shape[1]
    return padded, c_last


# ----------------------------------------------------------------------------
# Forward wrapper
# ----------------------------------------------------------------------------
def pointnet_forward(x, padded_params, c_last):
    """x: (B, n_points, feat_dim) f32.  Returns (B, C_last, 1) like PyTorch."""
    B, N, C_in = x.shape
    assert N % 8 == 0, "n_points must be a multiple of 8 (sublane alignment)"
    assert len(padded_params) == 5, "kernel is specialized to the 5-layer MLP"
    C_out_pad = padded_params[-1][1].shape[1]

    # ---- row-slab sizing:
    #   * VMEM cap ~2048 rows (live set ~R*128*14 B ≈ 3.7 MiB at 2048 rows),
    #   * cap BB at ceil(B/2) so the "parallel" grid has >= 2 steps for v7x's
    #     two TensorCores,
    #   * no divisibility requirement: pad the flattened row axis instead.
    ROW_CAP = 2048
    bb_vmem = max(1, ROW_CAP // N)
    bb_mega = max(1, (B + 1) // 2)
    BB = max(1, min(bb_vmem, bb_mega, B))
    G = -(-B // BB)                                  # ceil(B / BB) grid steps
    B_pad = G * BB

    x2d = x.reshape(B * N, C_in)
    if B_pad != B:
        # Tail batch elements: zero rows; their pooled max is discarded below.
        x2d = jnp.pad(x2d, ((0, (B_pad - B) * N), (0, 0)))

    flat_args = [x2d]
    in_specs = [pl.BlockSpec((BB * N, C_in), lambda i: (i, 0))]
    for w, b in padded_params:
        flat_args += [w, b]
        # Constant index_map -> single-buffer the VMEM-resident weights/biases.
        in_specs += [
            pl.BlockSpec(w.shape, lambda i: (0, 0), pipeline_mode=pl.Buffered(1)),
            pl.BlockSpec(b.shape, lambda i: (0, 0), pipeline_mode=pl.Buffered(1)),
        ]

    # ---- VMEM budget (per grid step), with 2x headroom, clamped under v7x's
    #      64 MiB physical VMEM (32 MiB scoped default).
    act_bytes = BB * N * 128 * (4 + 4 + 2 + 4)       # h f32, y f32, bf16 cast, prev f32
    in_block = 2 * BB * N * C_in * 4                 # double-buffered input slab
    out_block = 2 * BB * C_out_pad * 4
    wgt_bytes = sum(w.size * w.dtype.itemsize + b.size * 4
                    for w, b in padded_params)       # single-buffered
    vmem_limit = int(min(48 * 1024 * 1024,
                         max(16 * 1024 * 1024,
                             2 * (act_bytes + in_block + out_block + wgt_bytes))))

    flops = 2 * B_pad * N * sum(int(w.shape[0]) * int(w.shape[1])
                                for w, _ in padded_params)
    bytes_accessed = (B_pad * N * C_in * 4
                      + wgt_bytes
                      + B_pad * C_out_pad * 4)

    out = pl.pallas_call(
        pointnet_kernel,
        out_shape=jax.ShapeDtypeStruct((G, BB, C_out_pad), jnp.float32),
        grid=(G,),
        in_specs=in_specs,
        out_specs=pl.BlockSpec((1, BB, C_out_pad), lambda i: (i, 0, 0)),
        compiler_params=pltpu.CompilerParams(
            dimension_semantics=("parallel",),
            vmem_limit_bytes=vmem_limit),
        cost_estimate=pl.CostEstimate(
            flops=flops, transcendentals=0, bytes_accessed=bytes_accessed),
    )(*flat_args)

    # Free reshape (contiguous), drop padded batch rows and padded lanes, then
    # reshape to the PyTorch MaxPool1d output layout (B, C_last, 1).
    out = out.reshape(B_pad, C_out_pad)[:B, :c_last]
    return out.reshape(B, c_last, 1)


# ----------------------------------------------------------------------------
# Init + pure-JAX reference
# ----------------------------------------------------------------------------
def init_params(key, conv_dims):
    """Deterministic Conv1d(k=1) weights.  W as (C_in, C_out); b as (1, C_out)."""
    params = []
    for i in range(len(conv_dims) - 1):
        c_in, c_out = conv_dims[i], conv_dims[i + 1]
        key, kw, kb = jax.random.split(key, 3)
        bound = 1.0 / jnp.sqrt(jnp.float32(c_in))    # PyTorch-style fan-in bound
        w = jax.random.uniform(kw, (c_in, c_out), jnp.float32, -bound, bound)
        b = jax.random.uniform(kb, (1, c_out), jnp.float32, -bound, bound)
        params.append((w, b))
    return params


def pointnet_reference(x, params, use_bf16=False):
    """Pure-JAX reference mirroring the PyTorch forward semantics.

    With use_bf16=True it also mirrors the kernel's precision: layer 1 in f32,
    later layers as bf16 matmuls with f32 accumulation."""
    h = x  # (B, N, C)
    for li, (w, b) in enumerate(params):
        if use_bf16 and li > 0:
            y = jnp.einsum('bnc,cd->bnd',
                           h.astype(jnp.bfloat16), w.astype(jnp.bfloat16),
                           preferred_element_type=jnp.float32)
        else:
            y = jnp.einsum('bnc,cd->bnd', h, w,
                           preferred_element_type=jnp.float32)
        h = jnp.maximum(y + b, 0.0)
    pooled = jnp.max(h, axis=1)                      # (B, C_last)
    return pooled[:, :, None]                        # (B, C_last, 1)


# ----------------------------------------------------------------------------
# Main
# ----------------------------------------------------------------------------
if __name__ == "__main__":
    # Small shapes: batch=2, n_points = pooldim = 16, init_feat_dim=3,
    # conv_dims = [32, 64, 64, 128, 128] (module defaults for the MLP widths).
    B, N, FEAT = 2, 16, 3
    conv_dims = [FEAT, 32, 64, 64, 128, 128]

    key = jax.random.PRNGKey(0)
    key, kx = jax.random.split(key)
    x = jax.random.normal(kx, (B, N, FEAT), jnp.float32)
    params = init_params(key, conv_dims)

    # One-time parameter prep (padding + bf16 cast) — out of the hot path.
    padded_params, c_last = prepare_params(params, use_bf16=True)
    padded_params = jax.tree_util.tree_map(jax.block_until_ready, padded_params)

    fwd = jax.jit(pointnet_forward, static_argnums=2)
    out = fwd(x, padded_params, c_last)
    out = jax.block_until_ready(out)
    assert out.shape == (B, conv_dims[-1], 1), out.shape

    # Precision-matched reference (bf16 matmuls, f32 accumulation).
    ref_matched = pointnet_reference(x, params, use_bf16=True)
    assert jnp.allclose(out, ref_matched, atol=1e-2, rtol=1e-2), \
        "mismatch vs precision-matched reference"

    # Full-f32 reference: looser tolerance covering bf16 rounding only.
    ref_f32 = pointnet_reference(x, params, use_bf16=False)
    assert jnp.allclose(out, ref_f32, atol=5e-2, rtol=5e-2), \
        "mismatch vs f32 reference"

    print("KERNEL_OK")
</pallas_src>

<mosaic_0001>
module attributes {stable_mosaic.version = 11 : i64} {
  func.func @pointnet_kernel(%arg0: i32, %arg1: memref<16x3xf32, #tpu.memory_space<vmem>>, %arg2: memref<3x128xf32, #tpu.memory_space<vmem>>, %arg3: memref<1x128xf32, #tpu.memory_space<vmem>>, %arg4: memref<128x128xbf16, #tpu.memory_space<vmem>>, %arg5: memref<1x128xf32, #tpu.memory_space<vmem>>, %arg6: memref<128x128xbf16, #tpu.memory_space<vmem>>, %arg7: memref<1x128xf32, #tpu.memory_space<vmem>>, %arg8: memref<128x128xbf16, #tpu.memory_space<vmem>>, %arg9: memref<1x128xf32, #tpu.memory_space<vmem>>, %arg10: memref<128x128xbf16, #tpu.memory_space<vmem>>, %arg11: memref<1x128xf32, #tpu.memory_space<vmem>>, %arg12: memref<1x1x128xf32, #tpu.memory_space<vmem>>) attributes {dimension_semantics = [#tpu.dimension_semantics<parallel>], iteration_bounds = array<i64: 2>, scalar_prefetch = 0 : i64, scratch_operands = 0 : i64, tpu.core_type = #tpu.core_type<tc>, window_params = [{transform_indices = @transform_0, window_bounds = array<i64: 16, 3>}, {pipeline_mode = #tpu.pipeline_mode<synchronous>, transform_indices = @transform_1, window_bounds = array<i64: 3, 128>}, {pipeline_mode = #tpu.pipeline_mode<synchronous>, transform_indices = @transform_2, window_bounds = array<i64: 1, 128>}, {pipeline_mode = #tpu.pipeline_mode<synchronous>, transform_indices = @transform_3, window_bounds = array<i64: 128, 128>}, {pipeline_mode = #tpu.pipeline_mode<synchronous>, transform_indices = @transform_4, window_bounds = array<i64: 1, 128>}, {pipeline_mode = #tpu.pipeline_mode<synchronous>, transform_indices = @transform_5, window_bounds = array<i64: 128, 128>}, {pipeline_mode = #tpu.pipeline_mode<synchronous>, transform_indices = @transform_6, window_bounds = array<i64: 1, 128>}, {pipeline_mode = #tpu.pipeline_mode<synchronous>, transform_indices = @transform_7, window_bounds = array<i64: 128, 128>}, {pipeline_mode = #tpu.pipeline_mode<synchronous>, transform_indices = @transform_8, window_bounds = array<i64: 1, 128>}, {pipeline_mode = #tpu.pipeline_mode<synchronous>, transform_indices = @transform_9, window_bounds = array<i64: 128, 128>}, {pipeline_mode = #tpu.pipeline_mode<synchronous>, transform_indices = @transform_10, window_bounds = array<i64: 1, 128>}, {transform_indices = @transform_11, window_bounds = array<i64: 1, 1, 128>}]} {
    %c0 = arith.constant 0 : index
    %c0_0 = arith.constant 0 : index
    %0 = vector.load %arg1[%c0, %c0_0] : memref<16x3xf32, #tpu.memory_space<vmem>>, vector<16x3xf32>
    %c0_1 = arith.constant 0 : index
    %c0_2 = arith.constant 0 : index
    %1 = vector.load %arg2[%c0_1, %c0_2] : memref<3x128xf32, #tpu.memory_space<vmem>>, vector<3x128xf32>
    %c0_3 = arith.constant 0 : index
    %c0_4 = arith.constant 0 : index
    %2 = vector.load %arg3[%c0_3, %c0_4] : memref<1x128xf32, #tpu.memory_space<vmem>>, vector<1x128xf32>
    %3 = vector.shape_cast %2 : vector<1x128xf32> to vector<1x128xf32>
    %4 = vector.broadcast %3 : vector<1x128xf32> to vector<16x128xf32>
    %5 = vector.extract_strided_slice %0 {offsets = [0, 0], sizes = [16, 1], strides = [1, 1]} : vector<16x3xf32> to vector<16x1xf32>
    %6 = vector.extract_strided_slice %1 {offsets = [0, 0], sizes = [1, 128], strides = [1, 1]} : vector<3x128xf32> to vector<1x128xf32>
    %7 = vector.broadcast %5 : vector<16x1xf32> to vector<16x128xf32>
    %8 = vector.broadcast %6 : vector<1x128xf32> to vector<16x128xf32>
    %9 = arith.mulf %7, %8 : vector<16x128xf32>
    %10 = arith.addf %4, %9 : vector<16x128xf32>
    %11 = vector.extract_strided_slice %0 {offsets = [0, 1], sizes = [16, 1], strides = [1, 1]} : vector<16x3xf32> to vector<16x1xf32>
    %12 = vector.extract_strided_slice %1 {offsets = [1, 0], sizes = [1, 128], strides = [1, 1]} : vector<3x128xf32> to vector<1x128xf32>
    %13 = vector.broadcast %11 : vector<16x1xf32> to vector<16x128xf32>
    %14 = vector.broadcast %12 : vector<1x128xf32> to vector<16x128xf32>
    %15 = arith.mulf %13, %14 : vector<16x128xf32>
    %16 = arith.addf %10, %15 : vector<16x128xf32>
    %17 = vector.extract_strided_slice %0 {offsets = [0, 2], sizes = [16, 1], strides = [1, 1]} : vector<16x3xf32> to vector<16x1xf32>
    %18 = vector.extract_strided_slice %1 {offsets = [2, 0], sizes = [1, 128], strides = [1, 1]} : vector<3x128xf32> to vector<1x128xf32>
    %19 = vector.broadcast %17 : vector<16x1xf32> to vector<16x128xf32>
    %20 = vector.broadcast %18 : vector<1x128xf32> to vector<16x128xf32>
    %21 = arith.mulf %19, %20 : vector<16x128xf32>
    %22 = arith.addf %16, %21 : vector<16x128xf32>
    %cst = arith.constant 0.000000e+00 : f32
    %23 = vector.broadcast %cst : f32 to vector<16x128xf32>
    %24 = arith.maximumf %22, %23 : vector<16x128xf32>
    %25 = arith.truncf %24 : vector<16x128xf32> to vector<16x128xbf16>
    %c0_5 = arith.constant 0 : index
    %c0_6 = arith.constant 0 : index
    %26 = vector.load %arg4[%c0_5, %c0_6] : memref<128x128xbf16, #tpu.memory_space<vmem>>, vector<128x128xbf16>
    %cst_7 = arith.constant dense<0.000000e+00> : vector<16x128xf32>
    %27 = tpu.matmul %25, %26, %cst_7 {dimension_numbers = #tpu.dot_dimension_numbers<[1], [0], [0], [1], [0, 0, 1, 1], [], []>} : vector<16x128xbf16>, vector<128x128xbf16>, vector<16x128xf32> -> vector<16x128xf32>
    %c0_8 = arith.constant 0 : index
    %c0_9 = arith.constant 0 : index
    %28 = vector.load %arg5[%c0_8, %c0_9] : memref<1x128xf32, #tpu.memory_space<vmem>>, vector<1x128xf32>
    %29 = vector.broadcast %28 : vector<1x128xf32> to vector<16x128xf32>
    %30 = arith.addf %27, %29 : vector<16x128xf32>
    %cst_10 = arith.constant 0.000000e+00 : f32
    %31 = vector.broadcast %cst_10 : f32 to vector<16x128xf32>
    %32 = arith.maximumf %30, %31 : vector<16x128xf32>
    %33 = arith.truncf %32 : vector<16x128xf32> to vector<16x128xbf16>
    %c0_11 = arith.constant 0 : index
    %c0_12 = arith.constant 0 : index
    %34 = vector.load %arg6[%c0_11, %c0_12] : memref<128x128xbf16, #tpu.memory_space<vmem>>, vector<128x128xbf16>
    %cst_13 = arith.constant dense<0.000000e+00> : vector<16x128xf32>
    %35 = tpu.matmul %33, %34, %cst_13 {dimension_numbers = #tpu.dot_dimension_numbers<[1], [0], [0], [1], [0, 0, 1, 1], [], []>} : vector<16x128xbf16>, vector<128x128xbf16>, vector<16x128xf32> -> vector<16x128xf32>
    %c0_14 = arith.constant 0 : index
    %c0_15 = arith.constant 0 : index
    %36 = vector.load %arg7[%c0_14, %c0_15] : memref<1x128xf32, #tpu.memory_space<vmem>>, vector<1x128xf32>
    %37 = vector.broadcast %36 : vector<1x128xf32> to vector<16x128xf32>
    %38 = arith.addf %35, %37 : vector<16x128xf32>
    %cst_16 = arith.constant 0.000000e+00 : f32
    %39 = vector.broadcast %cst_16 : f32 to vector<16x128xf32>
    %40 = arith.maximumf %38, %39 : vector<16x128xf32>
    %41 = arith.truncf %40 : vector<16x128xf32> to vector<16x128xbf16>
    %c0_17 = arith.constant 0 : index
    %c0_18 = arith.constant 0 : index
    %42 = vector.load %arg8[%c0_17, %c0_18] : memref<128x128xbf16, #tpu.memory_space<vmem>>, vector<128x128xbf16>
    %cst_19 = arith.constant dense<0.000000e+00> : vector<16x128xf32>
    %43 = tpu.matmul %41, %42, %cst_19 {dimension_numbers = #tpu.dot_dimension_numbers<[1], [0], [0], [1], [0, 0, 1, 1], [], []>} : vector<16x128xbf16>, vector<128x128xbf16>, vector<16x128xf32> -> vector<16x128xf32>
    %c0_20 = arith.constant 0 : index
    %c0_21 = arith.constant 0 : index
    %44 = vector.load %arg9[%c0_20, %c0_21] : memref<1x128xf32, #tpu.memory_space<vmem>>, vector<1x128xf32>
    %45 = vector.broadcast %44 : vector<1x128xf32> to vector<16x128xf32>
    %46 = arith.addf %43, %45 : vector<16x128xf32>
    %cst_22 = arith.constant 0.000000e+00 : f32
    %47 = vector.broadcast %cst_22 : f32 to vector<16x128xf32>
    %48 = arith.maximumf %46, %47 : vector<16x128xf32>
    %49 = arith.truncf %48 : vector<16x128xf32> to vector<16x128xbf16>
    %c0_23 = arith.constant 0 : index
    %c0_24 = arith.constant 0 : index
    %50 = vector.load %arg10[%c0_23, %c0_24] : memref<128x128xbf16, #tpu.memory_space<vmem>>, vector<128x128xbf16>
    %cst_25 = arith.constant dense<0.000000e+00> : vector<16x128xf32>
    %51 = tpu.matmul %49, %50, %cst_25 {dimension_numbers = #tpu.dot_dimension_numbers<[1], [0], [0], [1], [0, 0, 1, 1], [], []>} : vector<16x128xbf16>, vector<128x128xbf16>, vector<16x128xf32> -> vector<16x128xf32>
    %c0_26 = arith.constant 0 : index
    %c0_27 = arith.constant 0 : index
    %52 = vector.load %arg11[%c0_26, %c0_27] : memref<1x128xf32, #tpu.memory_space<vmem>>, vector<1x128xf32>
    %53 = vector.broadcast %52 : vector<1x128xf32> to vector<16x128xf32>
    %54 = arith.addf %51, %53 : vector<16x128xf32>
    %cst_28 = arith.constant 0.000000e+00 : f32
    %55 = vector.broadcast %cst_28 : f32 to vector<16x128xf32>
    %56 = arith.maximumf %54, %55 : vector<16x128xf32>
    %57 = vector.shape_cast %56 : vector<16x128xf32> to vector<1x16x128xf32>
    %cst_29 = arith.constant dense<0xFF800000> : vector<1x128xf32>
    %58 = vector.multi_reduction <maximumf>, %57, %cst_29 [1] : vector<1x16x128xf32> to vector<1x128xf32>
    %c0_30 = arith.constant 0 : index
    %c0_31 = arith.constant 0 : index
    %c0_32 = arith.constant 0 : index
    %59 = vector.load %arg12[%c0_30, %c0_31, %c0_32] : memref<1x1x128xf32, #tpu.memory_space<vmem>>, vector<1x1x128xf32>
    %60 = vector.shape_cast %59 : vector<1x1x128xf32> to vector<1x128xf32>
    %61 = vector.shape_cast %58 : vector<1x128xf32> to vector<1x1x128xf32>
    tpu.vector_store %arg12[%c0_30, %c0_31, %c0_32], %61 {strides = array<i32>} : memref<1x1x128xf32, #tpu.memory_space<vmem>>, vector<1x1x128xf32>,
    return
  }
  func.func @transform_0(%arg0: i32) -> (i32, i32) {
    %c0_i32 = arith.constant 0 : i32
    %c0_i32_0 = arith.constant 0 : i32
    return %arg0, %c0_i32 : i32, i32
  }
  func.func @transform_1(%arg0: i32) -> (i32, i32) {
    %c0_i32 = arith.constant 0 : i32
    %c0_i32_0 = arith.constant 0 : i32
    %c0_i32_1 = arith.constant 0 : i32
    return %c0_i32, %c0_i32_0 : i32, i32
  }
  func.func @transform_2(%arg0: i32) -> (i32, i32) {
    %c0_i32 = arith.constant 0 : i32
    %c0_i32_0 = arith.constant 0 : i32
    %c0_i32_1 = arith.constant 0 : i32
    return %c0_i32, %c0_i32_0 : i32, i32
  }
  func.func @transform_3(%arg0: i32) -> (i32, i32) {
    %c0_i32 = arith.constant 0 : i32
    %c0_i32_0 = arith.constant 0 : i32
    %c0_i32_1 = arith.constant 0 : i32
    return %c0_i32, %c0_i32_0 : i32, i32
  }
  func.func @transform_4(%arg0: i32) -> (i32, i32) {
    %c0_i32 = arith.constant 0 : i32
    %c0_i32_0 = arith.constant 0 : i32
    %c0_i32_1 = arith.constant 0 : i32
    return %c0_i32, %c0_i32_0 : i32, i32
  }
  func.func @transform_5(%arg0: i32) -> (i32, i32) {
    %c0_i32 = arith.constant 0 : i32
    %c0_i32_0 = arith.constant 0 : i32
    %c0_i32_1 = arith.constant 0 : i32
    return %c0_i32, %c0_i32_0 : i32, i32
  }
  func.func @transform_6(%arg0: i32) -> (i32, i32) {
    %c0_i32 = arith.constant 0 : i32
    %c0_i32_0 = arith.constant 0 : i32
    %c0_i32_1 = arith.constant 0 : i32
    return %c0_i32, %c0_i32_0 : i32, i32
  }
  func.func @transform_7(%arg0: i32) -> (i32, i32) {
    %c0_i32 = arith.constant 0 : i32
    %c0_i32_0 = arith.constant 0 : i32
    %c0_i32_1 = arith.constant 0 : i32
    return %c0_i32, %c0_i32_0 : i32, i32
  }
  func.func @transform_8(%arg0: i32) -> (i32, i32) {
    %c0_i32 = arith.constant 0 : i32
    %c0_i32_0 = arith.constant 0 : i32
    %c0_i32_1 = arith.constant 0 : i32
    return %c0_i32, %c0_i32_0 : i32, i32
  }
  func.func @transform_9(%arg0: i32) -> (i32, i32) {
    %c0_i32 = arith.constant 0 : i32
    %c0_i32_0 = arith.constant 0 : i32
    %c0_i32_1 = arith.constant 0 : i32
    return %c0_i32, %c0_i32_0 : i32, i32
  }
  func.func @transform_10(%arg0: i32) -> (i32, i32) {
    %c0_i32 = arith.constant 0 : i32
    %c0_i32_0 = arith.constant 0 : i32
    %c0_i32_1 = arith.constant 0 : i32
    return %c0_i32, %c0_i32_0 : i32, i32
  }
  func.func @transform_11(%arg0: i32) -> (i32, i32, i32) {
    %c0_i32 = arith.constant 0 : i32
    %c0_i32_0 = arith.constant 0 : i32
    %c0_i32_1 = arith.constant 0 : i32
    return %arg0, %c0_i32, %c0_i32_0 : i32, i32, i32
  }
}

</mosaic_0001>

<llo_original>
// kernel: pointnet_forward.1
$region0: #{pointnet_forward.1}
  #allocation0 [shape = 'u32[]', space=smem, size = 0x4, offset = 0x4, fixed_abs, tag = 'smem constant byte address 0x4 - core index']
  #allocation1 [shape = 'u32[144,128]{1,0:T(1,128)}', space=vmem, size = 0x12000, scoped, tag = 'internal scratch']
  %s0 = inlined_call_operand.vmem [shape: f32[32,3], index: 0, kind: input, shape index: {}]
  %s1 = inlined_call_operand.vmem [shape: f32[3,128], index: 1, kind: input, shape index: {}]
  %s2 = inlined_call_operand.hbm [shape: f32[1,128], index: 2, kind: input, shape index: {}]
  %s3 = inlined_call_operand.hbm [shape: bf16[128,128], index: 3, kind: input, shape index: {}]
  %s4 = inlined_call_operand.hbm [shape: f32[1,128], index: 4, kind: input, shape index: {}]
  %s5 = inlined_call_operand.hbm [shape: bf16[128,128], index: 5, kind: input, shape index: {}]
  %s6 = inlined_call_operand.hbm [shape: f32[1,128], index: 6, kind: input, shape index: {}]
  %s7 = inlined_call_operand.vmem [shape: bf16[128,128], index: 7, kind: input, shape index: {}]
  %s8 = inlined_call_operand.vmem [shape: f32[1,128], index: 8, kind: input, shape index: {}]
  %s9 = inlined_call_operand.hbm [shape: bf16[128,128], index: 9, kind: input, shape index: {}]
  %s10 = inlined_call_operand.vmem [shape: f32[1,128], index: 10, kind: input, shape index: {}]
  %s11 = inlined_call_operand.hbm [shape: f32[2,1,128], index: 11, kind: output, shape index: {}]
  %s12 = sld [smem:[#allocation0]]
  $region101: #{pointnet_forward.1} parent=0
    _
  %s14 = ssub.s32 1, %s12
  %s15 = scalar_select 0, %s14, %s12
  $region1: #{pointnet_forward.1} parent=0
    #allocation2 [shape = 'u8[512]{0}', space=vmem, size = 0x400, scoped, tag = 'input window, operand 2, single buffered']
    #allocation3 [shape = 's32[2]{0}', space=sflag, size = 0x8, scoped, tag = 'scoped memory for pointnet_forward.1']
    #allocation4 [shape = 's32[2]{0}', space=sflag, size = 0x8, scoped, tag = 'scoped memory for pointnet_forward.1']
    #allocation5 [shape = 'u8[32768]{0}', space=vmem, size = 0x8000, scoped, tag = 'input window, operand 3, single buffered']
    #allocation6 [shape = 's32[1]{0}', space=sflag, size = 0x4, scoped, tag = 'scoped memory for pointnet_forward.1']
    #allocation7 [shape = 'u8[512]{0}', space=vmem, size = 0x400, scoped, tag = 'input window, operand 4, single buffered']
    #allocation8 [shape = 'u8[32768]{0}', space=vmem, size = 0x8000, scoped, tag = 'input window, operand 5, single buffered']
    #allocation9 [shape = 's32[1]{0}', space=sflag, size = 0x4, scoped, tag = 'scoped memory for pointnet_forward.1']
    #allocation10 [shape = 'u8[512]{0}', space=vmem, size = 0x400, scoped, tag = 'input window, operand 6, single buffered']
    #allocation11 [shape = 'u8[32768]{0}', space=vmem, size = 0x8000, scoped, tag = 'input window, operand 9, single buffered']
    #allocation12 [shape = 's32[1]{0}', space=sflag, size = 0x4, scoped, tag = 'scoped memory for pointnet_forward.1']
    #allocation13 [shape = 'u8[1024]{0}', space=vmem, size = 0x400, scoped, tag = 'output window, operand 0']
    %16 = vsyncpa [#allocation3], 0
    %17 = vsyncpa [#allocation6], 0
    %18 = vsyncpa [#allocation9], 0
    %19 = vsyncpa [#allocation12], 0
    %20 = vsyncpa [#allocation4], 0
    %s21 = scalar_lea.sflag [#allocation4], 1
    %22 = vsyncpa %s21, 0
    loop: start=0, step=1, limit=4
    $region2: #{pointnet_forward.1} parent=1 // loop_pre_header
      _
    $region3: #{pointnet_forward.1} parent=1 // loop_header
      %s24 = sphi 0, %s28
      %p25 = scmp.ge.s32.totalorder %s24, 4
      %s34 = sphi 0, %s36
      %s37 = sphi 0, %s34
      %s38 = sphi 0, %s37
      %s54 = sphi 0, %s38
      %s58 = sphi 0, %s58
      %s60 = sphi 0, %s58
      %s61 = sphi 0, %s60
      %s75 = sphi 0, %s61
      %s79 = sphi 0, %s79
      %s81 = sphi 0, %s79
      %s82 = sphi 0, %s81
      %s96 = sphi 0, %s82
      %s100 = sphi 0, %s100
      %s102 = sphi 0, %s100
      %s103 = sphi 0, %s102
      %s117 = sphi 0, %s103
      %s121 = sphi 0, %s121
      %s123 = sphi 0, %s121
      %s124 = sphi 0, %s123
      %s138 = sphi 0, %s124
      %s142 = sphi 0, %s142
      %s144 = sphi 0, %s142
      %s145 = sphi 0, %s144
      %s159 = sphi 0, %s145
      %s163 = sphi 0, %s163
      %s165 = sphi 0, %s163
      %s166 = sphi 0, %s165
      %s180 = sphi 0, %s166
      %s184 = sphi 0, %s184
      %s186 = sphi 0, %s184
      %s187 = sphi 0, %s186
      %s201 = sphi 0, %s187
      %s205 = sphi 0, %s205
      %s207 = sphi 0, %s205
      %s208 = sphi 0, %s207
      %s222 = sphi 0, %s208
      %s226 = sphi 0, %s226
      %s228 = sphi 0, %s226
      %s229 = sphi 0, %s228
      %s243 = sphi 0, %s229
      %s247 = sphi 0, %s247
      %s249 = sphi 0, %s247
      %s250 = sphi 0, %s249
      %s264 = sphi 0, %s250
      %s270 = sphi 0, %s272
      %s273 = sphi 0, %s270
      %s274 = sphi 0, %s273
      %s290 = sphi 0, %s274
    $region4: #{pointnet_forward.1} parent=1 // loop_header_branch
      %27 = sbr.rel (%p25) target = $region8
    $region5: #{pointnet_forward.1} parent=1 // loop_body
      %s29 = ssub.s32 %s24, 1
      %s30 = ssub.s32 %s24, 2
      %s31 = sadd.s32 %s24, 1
      %s32 = ssub.s32 %s24, %s31
      %p33 = scmp.eq.s32.totalorder %s32, 0
      %s35 = sadd.s32 %s34, 1
      %s36 = scalar_select %p33, %s34, %s35
      %p39 = pneg %p33
      %p40 = scmp.eq.s32.totalorder %s24, 1
      %p41 = por %p39, %p40
      %p42 = scmp.ne.s32.totalorder %s34, %s37
      %p43 = scmp.eq.s32.totalorder %s24, 0
      %p44 = por %p42, %p43
      %p45 = scmp.ne.s32.totalorder %s34, %s37
      %p46 = scmp.eq.s32.totalorder %s29, 1
      %p47 = por %p45, %p46
      %p48 = scmp.ne.s32.totalorder %s37, %s38
      %p49 = scmp.eq.s32.totalorder %s29, 0
      %p50 = por %p48, %p49
      %p51 = scmp.ne.s32.totalorder %s37, %s38
      %p52 = scmp.eq.s32.totalorder %s30, 1
      %p53 = por %p51, %p52
      %p55 = scmp.ne.s32.totalorder %s38, %s54
      %p56 = scmp.eq.s32.totalorder %s30, 0
      %p57 = por %p55, %p56
      %s59 = sadd.s32 %s58, 1
      %p62 = scmp.eq.s32.totalorder %s24, 1
      %p63 = scmp.ne.s32.totalorder %s58, %s60
      %p64 = scmp.eq.s32.totalorder %s24, 0
      %p65 = por %p63, %p64
      %p66 = scmp.ne.s32.totalorder %s58, %s60
      %p67 = scmp.eq.s32.totalorder %s29, 1
      %p68 = por %p66, %p67
      %p69 = scmp.ne.s32.totalorder %s60, %s61
      %p70 = scmp.eq.s32.totalorder %s29, 0
      %p71 = por %p69, %p70
      %p72 = scmp.ne.s32.totalorder %s60, %s61
      %p73 = scmp.eq.s32.totalorder %s30, 1
      %p74 = por %p72, %p73
      %p76 = scmp.ne.s32.totalorder %s61, %s75
      %p77 = scmp.eq.s32.totalorder %s30, 0
      %p78 = por %p76, %p77
      %s80 = sadd.s32 %s79, 1
      %p83 = scmp.eq.s32.totalorder %s24, 1
      %p84 = scmp.ne.s32.totalorder %s79, %s81
      %p85 = scmp.eq.s32.totalorder %s24, 0
      %p86 = por %p84, %p85
      %p87 = scmp.ne.s32.totalorder %s79, %s81
      %p88 = scmp.eq.s32.totalorder %s29, 1
      %p89 = por %p87, %p88
      %p90 = scmp.ne.s32.totalorder %s81, %s82
      %p91 = scmp.eq.s32.totalorder %s29, 0
      %p92 = por %p90, %p91
      %p93 = scmp.ne.s32.totalorder %s81, %s82
      %p94 = scmp.eq.s32.totalorder %s30, 1
      %p95 = por %p93, %p94
      %p97 = scmp.ne.s32.totalorder %s82, %s96
      %p98 = scmp.eq.s32.totalorder %s30, 0
      %p99 = por %p97, %p98
      %s101 = sadd.s32 %s100, 1
      %p104 = scmp.eq.s32.totalorder %s24, 1
      %p105 = scmp.ne.s32.totalorder %s100, %s102
      %p106 = scmp.eq.s32.totalorder %s24, 0
      %p107 = por %p105, %p106
      %p108 = scmp.ne.s32.totalorder %s100, %s102
      %p109 = scmp.eq.s32.totalorder %s29, 1
      %p110 = por %p108, %p109
      %p111 = scmp.ne.s32.totalorder %s102, %s103
      %p112 = scmp.eq.s32.totalorder %s29, 0
      %p113 = por %p111, %p112
      %p114 = scmp.ne.s32.totalorder %s102, %s103
      %p115 = scmp.eq.s32.totalorder %s30, 1
      %p116 = por %p114, %p115
      %p118 = scmp.ne.s32.totalorder %s103, %s117
      %p119 = scmp.eq.s32.totalorder %s30, 0
      %p120 = por %p118, %p119
      %s122 = sadd.s32 %s121, 1
      %p125 = scmp.eq.s32.totalorder %s24, 1
      %p126 = scmp.ne.s32.totalorder %s121, %s123
      %p127 = scmp.eq.s32.totalorder %s24, 0
      %p128 = por %p126, %p127
      %p129 = scmp.ne.s32.totalorder %s121, %s123
      %p130 = scmp.eq.s32.totalorder %s29, 1
      %p131 = por %p129, %p130
      %p132 = scmp.ne.s32.totalorder %s123, %s124
      %p133 = scmp.eq.s32.totalorder %s29, 0
      %p134 = por %p132, %p133
      %p135 = scmp.ne.s32.totalorder %s123, %s124
      %p136 = scmp.eq.s32.totalorder %s30, 1
      %p137 = por %p135, %p136
      %p139 = scmp.ne.s32.totalorder %s124, %s138
      %p140 = scmp.eq.s32.totalorder %s30, 0
      %p141 = por %p139, %p140
      %s143 = sadd.s32 %s142, 1
      %p146 = scmp.eq.s32.totalorder %s24, 1
      %p147 = scmp.ne.s32.totalorder %s142, %s144
      %p148 = scmp.eq.s32.totalorder %s24, 0
      %p149 = por %p147, %p148
      %p150 = scmp.ne.s32.totalorder %s142, %s144
      %p151 = scmp.eq.s32.totalorder %s29, 1
      %p152 = por %p150, %p151
      %p153 = scmp.ne.s32.totalorder %s144, %s145
      %p154 = scmp.eq.s32.totalorder %s29, 0
      %p155 = por %p153, %p154
      %p156 = scmp.ne.s32.totalorder %s144, %s145
      %p157 = scmp.eq.s32.totalorder %s30, 1
      %p158 = por %p156, %p157
      %p160 = scmp.ne.s32.totalorder %s145, %s159
      %p161 = scmp.eq.s32.totalorder %s30, 0
      %p162 = por %p160, %p161
      %s164 = sadd.s32 %s163, 1
      %p167 = scmp.eq.s32.totalorder %s24, 1
      %p168 = scmp.ne.s32.totalorder %s163, %s165
      %p169 = scmp.eq.s32.totalorder %s24, 0
      %p170 = por %p168, %p169
      %p171 = scmp.ne.s32.totalorder %s163, %s165
      %p172 = scmp.eq.s32.totalorder %s29, 1
      %p173 = por %p171, %p172
      %p174 = scmp.ne.s32.totalorder %s165, %s166
      %p175 = scmp.eq.s32.totalorder %s29, 0
      %p176 = por %p174, %p175
      %p177 = scmp.ne.s32.totalorder %s165, %s166
      %p178 = scmp.eq.s32.totalorder %s30, 1
      %p179 = por %p177, %p178
      %p181 = scmp.ne.s32.totalorder %s166, %s180
      %p182 = scmp.eq.s32.totalorder %s30, 0
      %p183 = por %p181, %p182
      %s185 = sadd.s32 %s184, 1
      %p188 = scmp.eq.s32.totalorder %s24, 1
      %p189 = scmp.ne.s32.totalorder %s184, %s186
      %p190 = scmp.eq.s32.totalorder %s24, 0
      %p191 = por %p189, %p190
      %p192 = scmp.ne.s32.totalorder %s184, %s186
      %p193 = scmp.eq.s32.totalorder %s29, 1
      %p194 = por %p192, %p193
      %p195 = scmp.ne.s32.totalorder %s186, %s187
      %p196 = scmp.eq.s32.totalorder %s29, 0
      %p197 = por %p195, %p196
      %p198 = scmp.ne.s32.totalorder %s186, %s187
      %p199 = scmp.eq.s32.totalorder %s30, 1
      %p200 = por %p198, %p199
      %p202 = scmp.ne.s32.totalorder %s187, %s201
      %p203 = scmp.eq.s32.totalorder %s30, 0
      %p204 = por %p202, %p203
      %s206 = sadd.s32 %s205, 1
      %p209 = scmp.eq.s32.totalorder %s24, 1
      %p210 = scmp.ne.s32.totalorder %s205, %s207
      %p211 = scmp.eq.s32.totalorder %s24, 0
      %p212 = por %p210, %p211
      %p213 = scmp.ne.s32.totalorder %s205, %s207
      %p214 = scmp.eq.s32.totalorder %s29, 1
      %p215 = por %p213, %p214
      %p216 = scmp.ne.s32.totalorder %s207, %s208
      %p217 = scmp.eq.s32.totalorder %s29, 0
      %p218 = por %p216, %p217
      %p219 = scmp.ne.s32.totalorder %s207, %s208
      %p220 = scmp.eq.s32.totalorder %s30, 1
      %p221 = por %p219, %p220
      %p223 = scmp.ne.s32.totalorder %s208, %s222
      %p224 = scmp.eq.s32.totalorder %s30, 0
      %p225 = por %p223, %p224
      %s227 = sadd.s32 %s226, 1
      %p230 = scmp.eq.s32.totalorder %s24, 1
      %p231 = scmp.ne.s32.totalorder %s226, %s228
      %p232 = scmp.eq.s32.totalorder %s24, 0
      %p233 = por %p231, %p232
      %p234 = scmp.ne.s32.totalorder %s226, %s228
      %p235 = scmp.eq.s32.totalorder %s29, 1
      %p236 = por %p234, %p235
      %p237 = scmp.ne.s32.totalorder %s228, %s229
      %p238 = scmp.eq.s32.totalorder %s29, 0
      %p239 = por %p237, %p238
      %p240 = scmp.ne.s32.totalorder %s228, %s229
      %p241 = scmp.eq.s32.totalorder %s30, 1
      %p242 = por %p240, %p241
      %p244 = scmp.ne.s32.totalorder %s229, %s243
      %p245 = scmp.eq.s32.totalorder %s30, 0
      %p246 = por %p244, %p245
      %s248 = sadd.s32 %s247, 1
      %p251 = scmp.eq.s32.totalorder %s24, 1
      %p252 = scmp.ne.s32.totalorder %s247, %s249
      %p253 = scmp.eq.s32.totalorder %s24, 0
      %p254 = por %p252, %p253
      %p255 = scmp.ne.s32.totalorder %s247, %s249
      %p256 = scmp.eq.s32.totalorder %s29, 1
      %p257 = por %p255, %p256
      %p258 = scmp.ne.s32.totalorder %s249, %s250
      %p259 = scmp.eq.s32.totalorder %s29, 0
      %p260 = por %p258, %p259
      %p261 = scmp.ne.s32.totalorder %s249, %s250
      %p262 = scmp.eq.s32.totalorder %s30, 1
      %p263 = por %p261, %p262
      %p265 = scmp.ne.s32.totalorder %s250, %s264
      %p266 = scmp.eq.s32.totalorder %s30, 0
      %p267 = por %p265, %p266
      %s268 = ssub.s32 %s24, %s31
      %p269 = scmp.eq.s32.totalorder %s268, 0
      %s271 = sadd.s32 %s270, 1
      %s272 = scalar_select %p269, %s270, %s271
      %p275 = pneg %p269
      %p276 = scmp.eq.s32.totalorder %s24, 1
      %p277 = por %p275, %p276
      %p278 = scmp.ne.s32.totalorder %s270, %s273
      %p279 = scmp.eq.s32.totalorder %s24, 0
      %p280 = por %p278, %p279
      %p281 = scmp.ne.s32.totalorder %s270, %s273
      %p282 = scmp.eq.s32.totalorder %s29, 1
      %p283 = por %p281, %p282
      %p284 = scmp.ne.s32.totalorder %s273, %s274
      %p285 = scmp.eq.s32.totalorder %s29, 0
      %p286 = por %p284, %p285
      %p287 = scmp.ne.s32.totalorder %s273, %s274
      %p288 = scmp.eq.s32.totalorder %s30, 1
      %p289 = por %p287, %p288
      %p291 = scmp.ne.s32.totalorder %s274, %s290
      %p292 = scmp.eq.s32.totalorder %s30, 0
      %p293 = por %p291, %p292
      %p294 = scmp.le.s32.totalorder 1, %s24
      %p295 = scmp.lt.s32.totalorder %s24, 3
      %p296 = pnand %p294, %p295
      %p297 = pneg %p296
      // Predicated region
      $region9: #{pointnet_forward.1} parent=5 // pred_check
        _
      $region10: #{pointnet_forward.1} parent=5 // pred_check_branch
        %299 = sbr.rel (%p296) target = $region12
      $region11: #{pointnet_forward.1} parent=5 // pred_region
        %s300 = ssub.s32 %s24, 1
        // Predicated region
        $region13: #{pointnet_forward.1} parent=11 // pred_check
          %p301 = pneg %p71
        $region14: #{pointnet_forward.1} parent=11 // pred_check_branch
          %303 = sbr.rel (%p301) target = $region16
        $region15: #{pointnet_forward.1} parent=11 // pred_region
          _
        $region16: #{pointnet_forward.1} parent=11 // pred_fallthru
          _
        // Predicated region
        $region17: #{pointnet_forward.1} parent=11 // pred_check
          %p304 = pneg %p92
        $region18: #{pointnet_forward.1} parent=11 // pred_check_branch
          %306 = sbr.rel (%p304) target = $region20
        $region19: #{pointnet_forward.1} parent=11 // pred_region
          %s308 = ssub.s32 16, 16
          %309 = vsyncadd [#allocation3], %s308
          %s311 = sshll.u32 [#allocation2], 4
          %s312 = int_to_ptr.vmem [resolvable:$true] %s311
          %314 = dma.hbm_to_vmem [thread:$0]  %s2, 16, %s312, [#allocation3]
        $region20: #{pointnet_forward.1} parent=11 // pred_fallthru
          _
        // Predicated region
        $region21: #{pointnet_forward.1} parent=11 // pred_check
          %p315 = pneg %p113
        $region22: #{pointnet_forward.1} parent=11 // pred_check_branch
          %317 = sbr.rel (%p315) target = $region24
        $region23: #{pointnet_forward.1} parent=11 // pred_region
          %s319 = ssub.s32 1024, 1024
          %320 = vsyncadd [#allocation6], %s319
          %s321 = sshll.u32 [#allocation5], 4
          %s322 = int_to_ptr.vmem [resolvable:$true] %s321
          %327 = dma.hbm_to_vmem [thread:$0]  %s3, 1024, %s322, [#allocation6], 64, 64, 4
        $region24: #{pointnet_forward.1} parent=11 // pred_fallthru
          _
        // Predicated region
        $region25: #{pointnet_forward.1} parent=11 // pred_check
          %p328 = pneg %p134
        $region26: #{pointnet_forward.1} parent=11 // pred_check_branch
          %330 = sbr.rel (%p328) target = $region28
        $region27: #{pointnet_forward.1} parent=11 // pred_region
          %s332 = ssub.s32 16, 16
          %333 = vsyncadd [#allocation6], %s332
          %s335 = sshll.u32 [#allocation7], 4
          %s336 = int_to_ptr.vmem [resolvable:$true] %s335
          %338 = dma.hbm_to_vmem [thread:$0]  %s4, 16, %s336, [#allocation6]
        $region28: #{pointnet_forward.1} parent=11 // pred_fallthru
          _
        // Predicated region
        $region29: #{pointnet_forward.1} parent=11 // pred_check
          %p339 = pneg %p155
        $region30: #{pointnet_forward.1} parent=11 // pred_check_branch
          %341 = sbr.rel (%p339) target = $region32
        $region31: #{pointnet_forward.1} parent=11 // pred_region
          %s343 = ssub.s32 1024, 1024
          %344 = vsyncadd [#allocation9], %s343
          %s345 = sshll.u32 [#allocation8], 4
          %s346 = int_to_ptr.vmem [resolvable:$true] %s345
          %351 = dma.hbm_to_vmem [thread:$0]  %s5, 1024, %s346, [#allocation9], 64, 64, 4
        $region32: #{pointnet_forward.1} parent=11 // pred_fallthru
          _
        // Predicated region
        $region33: #{pointnet_forward.1} parent=11 // pred_check
          %p352 = pneg %p176
        $region34: #{pointnet_forward.1} parent=11 // pred_check_branch
          %354 = sbr.rel (%p352) target = $region36
        $region35: #{pointnet_forward.1} parent=11 // pred_region
          %s356 = ssub.s32 16, 16
          %357 = vsyncadd [#allocation9], %s356
          %s359 = sshll.u32 [#allocation10], 4
          %s360 = int_to_ptr.vmem [resolvable:$true] %s359
          %362 = dma.hbm_to_vmem [thread:$0]  %s6, 16, %s360, [#allocation9]
        $region36: #{pointnet_forward.1} parent=11 // pred_fallthru
          _
        // Predicated region
        $region37: #{pointnet_forward.1} parent=11 // pred_check
          %p363 = pneg %p197
        $region38: #{pointnet_forward.1} parent=11 // pred_check_branch
          %365 = sbr.rel (%p363) target = $region40
        $region39: #{pointnet_forward.1} parent=11 // pred_region
          _
        $region40: #{pointnet_forward.1} parent=11 // pred_fallthru
          _
        // Predicated region
        $region41: #{pointnet_forward.1} parent=11 // pred_check
          %p366 = pneg %p218
        $region42: #{pointnet_forward.1} parent=11 // pred_check_branch
          %368 = sbr.rel (%p366) target = $region44
        $region43: #{pointnet_forward.1} parent=11 // pred_region
          _
        $region44: #{pointnet_forward.1} parent=11 // pred_fallthru
          _
        // Predicated region
        $region45: #{pointnet_forward.1} parent=11 // pred_check
          %p369 = pneg %p239
        $region46: #{pointnet_forward.1} parent=11 // pred_check_branch
          %371 = sbr.rel (%p369) target = $region48
        $region47: #{pointnet_forward.1} parent=11 // pred_region
          %s373 = ssub.s32 1024, 1024
          %374 = vsyncadd [#allocation12], %s373
          %s375 = sshll.u32 [#allocation11], 4
          %s376 = int_to_ptr.vmem [resolvable:$true] %s375
          %381 = dma.hbm_to_vmem [thread:$0]  %s9, 1024, %s376, [#allocation12], 64, 64, 4
        $region48: #{pointnet_forward.1} parent=11 // pred_fallthru
          _
        // Predicated region
        $region49: #{pointnet_forward.1} parent=11 // pred_check
          %p382 = pneg %p260
        $region50: #{pointnet_forward.1} parent=11 // pred_check_branch
          %384 = sbr.rel (%p382) target = $region52
        $region51: #{pointnet_forward.1} parent=11 // pred_region
          _
        $region52: #{pointnet_forward.1} parent=11 // pred_fallthru
          _
      $region12: #{pointnet_forward.1} parent=5 // pred_fallthru
        _
      %p385 = scmp.lt.s32.totalorder %s24, 2
      // Predicated region
      $region53: #{pointnet_forward.1} parent=5 // pred_check
        %p386 = pneg %p385
      $region54: #{pointnet_forward.1} parent=5 // pred_check_branch
        %388 = sbr.rel (%p386) target = $region56
      $region55: #{pointnet_forward.1} parent=5 // pred_region
        // Predicated region
        $region57: #{pointnet_forward.1} parent=55 // pred_check
          %p389 = pneg %p44
        $region58: #{pointnet_forward.1} parent=55 // pred_check_branch
          %391 = sbr.rel (%p389) target = $region60
        $region59: #{pointnet_forward.1} parent=55 // pred_region
          %s392 = smul.u32 2, %s24
          %p393 = scmp.lt.s32.totalorder %s392, 3
          %s394 = scalar_select %p393, %s392, 3
          %s395 = smul.addr %s394, 8
          %s396 = scalar_lea.vmem %s0, %s395
          %s397 = smul.u32 2, %s24
        $region60: #{pointnet_forward.1} parent=55 // pred_fallthru
          _
      $region56: #{pointnet_forward.1} parent=5 // pred_fallthru
        _
      %p398 = scmp.le.s32.totalorder 1, %s24
      %p399 = scmp.lt.s32.totalorder %s24, 3
      %p400 = pnand %p398, %p399
      %p401 = pneg %p400
      // Predicated region
      $region61: #{pointnet_forward.1} parent=5 // pred_check
        _
      $region62: #{pointnet_forward.1} parent=5 // pred_check_branch
        %403 = sbr.rel (%p400) target = $region64
      $region63: #{pointnet_forward.1} parent=5 // pred_region
        %s404 = ssub.s32 %s24, 1
        // Predicated region
        $region65: #{pointnet_forward.1} parent=63 // pred_check
          %p405 = pneg %p92
        $region66: #{pointnet_forward.1} parent=63 // pred_check_branch
          %407 = sbr.rel (%p405) target = $region68
        $region67: #{pointnet_forward.1} parent=63 // pred_region
          %408 = dma.done [#allocation3], 16
        $region68: #{pointnet_forward.1} parent=63 // pred_fallthru
          _
        // Predicated region
        $region69: #{pointnet_forward.1} parent=63 // pred_check
          %p409 = pneg %p113
        $region70: #{pointnet_forward.1} parent=63 // pred_check_branch
          %411 = sbr.rel (%p409) target = $region72
        $region71: #{pointnet_forward.1} parent=63 // pred_region
          %412 = dma.done [#allocation6], 1024
        $region72: #{pointnet_forward.1} parent=63 // pred_fallthru
          _
        // Predicated region
        $region73: #{pointnet_forward.1} parent=63 // pred_check
          %p413 = pneg %p134
        $region74: #{pointnet_forward.1} parent=63 // pred_check_branch
          %415 = sbr.rel (%p413) target = $region76
        $region75: #{pointnet_forward.1} parent=63 // pred_region
          %416 = dma.done [#allocation6], 16
        $region76: #{pointnet_forward.1} parent=63 // pred_fallthru
          _
        // Predicated region
        $region77: #{pointnet_forward.1} parent=63 // pred_check
          %p417 = pneg %p155
        $region78: #{pointnet_forward.1} parent=63 // pred_check_branch
          %419 = sbr.rel (%p417) target = $region80
        $region79: #{pointnet_forward.1} parent=63 // pred_region
          %420 = dma.done [#allocation9], 1024
        $region80: #{pointnet_forward.1} parent=63 // pred_fallthru
          _
        // Predicated region
        $region81: #{pointnet_forward.1} parent=63 // pred_check
          %p421 = pneg %p176
        $region82: #{pointnet_forward.1} parent=63 // pred_check_branch
          %423 = sbr.rel (%p421) target = $region84
        $region83: #{pointnet_forward.1} parent=63 // pred_region
          %424 = dma.done [#allocation9], 16
        $region84: #{pointnet_forward.1} parent=63 // pred_fallthru
          _
        // Predicated region
        $region85: #{pointnet_forward.1} parent=63 // pred_check
          %p425 = pneg %p239
        $region86: #{pointnet_forward.1} parent=63 // pred_check_branch
          %427 = sbr.rel (%p425) target = $region88
        $region87: #{pointnet_forward.1} parent=63 // pred_region
          %428 = dma.done [#allocation12], 1024
        $region88: #{pointnet_forward.1} parent=63 // pred_fallthru
          _
        %s429 = smul.u32 2, %s29
        %p430 = scmp.lt.s32.totalorder %s429, 3
        %s431 = scalar_select %p430, %s429, 3
        %s432 = smul.addr %s431, 8
        %s433 = scalar_lea.vmem %s0, %s432
        %p434 = pneg %p50
        %p435 = pneg %p47
        %p436 = pneg %p71
        %p437 = pneg %p68
        %p438 = pneg %p92
        %p439 = pneg %p89
        %p440 = pneg %p113
        %p441 = pneg %p110
        %p442 = pneg %p134
        %p443 = pneg %p131
        %p444 = pneg %p155
        %p445 = pneg %p152
        %p446 = pneg %p176
        %p447 = pneg %p173
        %p448 = pneg %p197
        %p449 = pneg %p194
        %p450 = pneg %p218
        %p451 = pneg %p215
        %p452 = pneg %p239
        %p453 = pneg %p236
        %p454 = pneg %p260
        %p455 = pneg %p257
        %p456 = pneg %p286
        %p457 = pneg %p283
        %s458 = sand.u32 %s273, 1
        %s459 = scalar_lea.sflag [#allocation4], %s458
        %s460 = sand.u32 %s273, 1
        %s461 = scalar_lea.vmem [#allocation13], %s460
        %s462 = smul.u32 2, %s29
        %p463 = scmp.lt.s32.totalorder %s462, 3
        %s464 = scalar_select %p463, %s462, 3
        %s465 = smul.addr %s464, 8
        %s466 = scalar_lea.vmem %s0, %s465
        %s467 = smul.u32 2, %s29
        %v469 = vld [vmem:[%s466] sm:$0xff]
        %v470 = vld [vmem:[%s466 + $0x8] sm:$0xff]
        %v471 = vld [vmem:[%s1] sm:$0x7]
        %v472 = vld [vmem:[#allocation2] sm:$0x1]
        %v474 = vlaneseq
        %v475 = vshrl.u32 %v474, 7
        %v476 = vsub.s32 0, %v475
        %v477 = vrot.slane %v472, %v476
        %480 = vset.pattern.permute.xlu0 0
        %481 = vperm.xlu0 %480, %v469
        %v482 = vpop.permute.xlu0 %481
        %485 = vset.pattern.permute.xlu0 0
        %486 = vperm.xlu0 %485, %v470
        %v487 = vpop.permute.xlu0 %486
        %v489 = vlaneseq
        %v490 = vshrl.u32 %v489, 7
        %v491 = vsub.s32 0, %v490
        %v492 = vrot.slane %v471, %v491
        %v493 = vmul.f32 %v482, %v492
        %v494 = vmul.f32 %v487, %v492
        %v495 = vadd.f32 %v477, %v493
        %v496 = vadd.f32 %v477, %v494
        %497 = vset.pattern.permute.xlu0 1
        %498 = vperm.xlu0 %497, %v469
        %v499 = vpop.permute.xlu0 %498
        %501 = vset.pattern.permute.xlu0 1
        %502 = vperm.xlu0 %501, %v470
        %v503 = vpop.permute.xlu0 %502
        %v505 = vlaneseq
        %v506 = vshrl.u32 %v505, 7
        %v507 = vsub.s32 1, %v506
        %v508 = vrot.slane %v471, %v507
        %v509 = vmul.f32 %v499, %v508
        %v510 = vmul.f32 %v503, %v508
        %v511 = vadd.f32 %v495, %v509
        %v512 = vadd.f32 %v496, %v510
        %513 = vset.pattern.permute.xlu0 2
        %514 = vperm.xlu0 %513, %v469
        %v515 = vpop.permute.xlu0 %514
        %517 = vset.pattern.permute.xlu0 2
        %518 = vperm.xlu0 %517, %v470
        %v519 = vpop.permute.xlu0 %518
        %v521 = vlaneseq
        %v522 = vshrl.u32 %v521, 7
        %v523 = vsub.s32 2, %v522
        %v524 = vrot.slane %v471, %v523
        %v525 = vmul.f32 %v515, %v524
        %v526 = vmul.f32 %v519, %v524
        %v527 = vadd.f32 %v511, %v525
        %v528 = vadd.f32 %v512, %v526
        %v529 = vmax.f32 %v527, 0.0
        %v530 = vmax.f32 %v528, 0.0
        %v531 = vpack.c.bf16 %v530, %v529
        %v532 = vld [vmem:[#allocation5] sm:$0xf]
        %v533 = vld [vmem:[#allocation5 + $0x4] sm:$0xf]
        %v534 = vld [vmem:[#allocation5 + $0x8] sm:$0xf]
        %v535 = vld [vmem:[#allocation5 + $0xc] sm:$0xf]
        %v536 = vld [vmem:[#allocation5 + $0x10] sm:$0xf]
        %v537 = vld [vmem:[#allocation5 + $0x14] sm:$0xf]
        %v538 = vld [vmem:[#allocation5 + $0x18] sm:$0xf]
        %v539 = vld [vmem:[#allocation5 + $0x1c] sm:$0xf]
        %v540 = vld [vmem:[#allocation5 + $0x20] sm:$0xf]
        %v541 = vld [vmem:[#allocation5 + $0x24] sm:$0xf]
        %v542 = vld [vmem:[#allocation5 + $0x28] sm:$0xf]
        %v543 = vld [vmem:[#allocation5 + $0x2c] sm:$0xf]
        %v544 = vld [vmem:[#allocation5 + $0x30] sm:$0xf]
        %v545 = vld [vmem:[#allocation5 + $0x34] sm:$0xf]
        %v546 = vld [vmem:[#allocation5 + $0x38] sm:$0xf]
        %v547 = vld [vmem:[#allocation5 + $0x3c] sm:$0xf]
        %v548 = vld [vmem:[#allocation7] sm:$0x1]
        %v550 = vlaneseq
        %v551 = vshrl.u32 %v550, 7
        %v552 = vsub.s32 0, %v551
        %v553 = vrot.slane %v548, %v552
        %v571 = vunpack.c.l.b16 %v532
        %v572 = vunpack.c.l.b16 %v533
        %v573 = vunpack.c.l.b16 %v534
        %v574 = vunpack.c.l.b16 %v535
        %v575 = vunpack.c.l.b16 %v536
        %v576 = vunpack.c.l.b16 %v537
        %v577 = vunpack.c.l.b16 %v538
        %v578 = vunpack.c.l.b16 %v539
        %v579 = vunpack.c.l.b16 %v540
        %v580 = vunpack.c.l.b16 %v541
        %v581 = vunpack.c.l.b16 %v542
        %v582 = vunpack.c.l.b16 %v543
        %v583 = vunpack.c.l.b16 %v544
        %v584 = vunpack.c.l.b16 %v545
        %v585 = vunpack.c.l.b16 %v546
        %v586 = vunpack.c.l.b16 %v547
        %v587 = vpack.c.b16 %v572, %v571
        %v588 = vpack.c.b16 %v574, %v573
        %v589 = vpack.c.b16 %v576, %v575
        %v590 = vpack.c.b16 %v578, %v577
        %v591 = vpack.c.b16 %v580, %v579
        %v592 = vpack.c.b16 %v582, %v581
        %v593 = vpack.c.b16 %v584, %v583
        %v594 = vpack.c.b16 %v586, %v585
        %603 = vmatprep.subr.bf16.mxu0 0
        %604 = vmatpush1.bf16.msra.mxu0 %v587
        %605 = vmatprep.subr.bf16.mxu0 0
        %606 = vmatpush1.bf16.msra.mxu0 %v588
        %607 = vmatprep.subr.bf16.mxu0 0
        %608 = vmatpush1.bf16.msra.mxu0 %v589
        %609 = vmatprep.subr.bf16.mxu0 0
        %610 = vmatpush1.bf16.msra.mxu0 %v590
        %611 = vmatprep.subr.bf16.mxu0 0
        %612 = vmatpush1.bf16.msra.mxu0 %v591
        %613 = vmatprep.subr.bf16.mxu0 0
        %614 = vmatpush1.bf16.msra.mxu0 %v592
        %615 = vmatprep.subr.bf16.mxu0 0
        %616 = vmatpush1.bf16.msra.mxu0 %v593
        %617 = vmatprep.subr.bf16.mxu0 0
        %618 = vmatpush1.bf16.msra.mxu0 %v594
        %619 = vmatprep.subr.bf16.mxu0 0
        %620 = vmatpush1.bf16.msra.mxu0 0
        %621 = vmatprep.subr.bf16.mxu0 0
        %622 = vmatpush1.bf16.msra.mxu0 0
        %623 = vmatprep.subr.bf16.mxu0 0
        %624 = vmatpush1.bf16.msra.mxu0 0
        %625 = vmatprep.subr.bf16.mxu0 0
        %626 = vmatpush1.bf16.msra.mxu0 0
        %627 = vmatprep.subr.bf16.mxu0 0
        %628 = vmatpush1.bf16.msra.mxu0 0
        %629 = vmatprep.subr.bf16.mxu0 0
        %630 = vmatpush1.bf16.msra.mxu0 0
        %631 = vmatprep.subr.bf16.mxu0 0
        %632 = vmatpush1.bf16.msra.mxu0 0
        %633 = vmatprep.subr.bf16.mxu0 0
        %634 = vmatpush1.bf16.msra.mxu0 0
        %635 = vmatprep.mubr.bf16.mxu0 0
        %636 = vmatmul.mubr.bf16.gmra.mrb[0].mxu0 %v531
        %v637 = vpop.f32.mrb[0].mxu0
        %v638 = vadd.f32 %v553, %v637
        %v639 = vpop.f32.mrb[0].mxu0
        %v640 = vpop.f32.mrb[0].mxu0
        %v641 = vadd.f32 %v553, %v640
        %v642 = vpop.f32.mrb[0].mxu0
        %643 = vdwg.mxu0
        %v644 = vmax.f32 %v638, 0.0
        %v645 = vmax.f32 %v641, 0.0
        %v646 = vpack.c.bf16 %v645, %v644
        %v647 = vld [vmem:[#allocation8] sm:$0xf]
        %v648 = vld [vmem:[#allocation8 + $0x4] sm:$0xf]
        %v649 = vld [vmem:[#allocation8 + $0x8] sm:$0xf]
        %v650 = vld [vmem:[#allocation8 + $0xc] sm:$0xf]
        %v651 = vld [vmem:[#allocation8 + $0x10] sm:$0xf]
        %v652 = vld [vmem:[#allocation8 + $0x14] sm:$0xf]
        %v653 = vld [vmem:[#allocation8 + $0x18] sm:$0xf]
        %v654 = vld [vmem:[#allocation8 + $0x1c] sm:$0xf]
        %v655 = vld [vmem:[#allocation8 + $0x20] sm:$0xf]
        %v656 = vld [vmem:[#allocation8 + $0x24] sm:$0xf]
        %v657 = vld [vmem:[#allocation8 + $0x28] sm:$0xf]
        %v658 = vld [vmem:[#allocation8 + $0x2c] sm:$0xf]
        %v659 = vld [vmem:[#allocation8 + $0x30] sm:$0xf]
        %v660 = vld [vmem:[#allocation8 + $0x34] sm:$0xf]
        %v661 = vld [vmem:[#allocation8 + $0x38] sm:$0xf]
        %v662 = vld [vmem:[#allocation8 + $0x3c] sm:$0xf]
        %v663 = vld [vmem:[#allocation10] sm:$0x1]
        %v665 = vlaneseq
        %v666 = vshrl.u32 %v665, 7
        %v667 = vsub.s32 0, %v666
        %v668 = vrot.slane %v663, %v667
        %v686 = vunpack.c.l.b16 %v647
        %v687 = vunpack.c.l.b16 %v648
        %v688 = vunpack.c.l.b16 %v649
        %v689 = vunpack.c.l.b16 %v650
        %v690 = vunpack.c.l.b16 %v651
        %v691 = vunpack.c.l.b16 %v652
        %v692 = vunpack.c.l.b16 %v653
        %v693 = vunpack.c.l.b16 %v654
        %v694 = vunpack.c.l.b16 %v655
        %v695 = vunpack.c.l.b16 %v656
        %v696 = vunpack.c.l.b16 %v657
        %v697 = vunpack.c.l.b16 %v658
        %v698 = vunpack.c.l.b16 %v659
        %v699 = vunpack.c.l.b16 %v660
        %v700 = vunpack.c.l.b16 %v661
        %v701 = vunpack.c.l.b16 %v662
        %v702 = vpack.c.b16 %v687, %v686
        %v703 = vpack.c.b16 %v689, %v688
        %v704 = vpack.c.b16 %v691, %v690
        %v705 = vpack.c.b16 %v693, %v692
        %v706 = vpack.c.b16 %v695, %v694
        %v707 = vpack.c.b16 %v697, %v696
        %v708 = vpack.c.b16 %v699, %v698
        %v709 = vpack.c.b16 %v701, %v700
        %718 = vmatprep.subr.bf16.mxu0 0
        %719 = vmatpush1.bf16.msra.mxu0 %v702
        %720 = vmatprep.subr.bf16.mxu0 0
        %721 = vmatpush1.bf16.msra.mxu0 %v703
        %722 = vmatprep.subr.bf16.mxu0 0
        %723 = vmatpush1.bf16.msra.mxu0 %v704
        %724 = vmatprep.subr.bf16.mxu0 0
        %725 = vmatpush1.bf16.msra.mxu0 %v705
        %726 = vmatprep.subr.bf16.mxu0 0
        %727 = vmatpush1.bf16.msra.mxu0 %v706
        %728 = vmatprep.subr.bf16.mxu0 0
        %729 = vmatpush1.bf16.msra.mxu0 %v707
        %730 = vmatprep.subr.bf16.mxu0 0
        %731 = vmatpush1.bf16.msra.mxu0 %v708
        %732 = vmatprep.subr.bf16.mxu0 0
        %733 = vmatpush1.bf16.msra.mxu0 %v709
        %734 = vmatprep.subr.bf16.mxu0 0
        %735 = vmatpush1.bf16.msra.mxu0 0
        %736 = vmatprep.subr.bf16.mxu0 0
        %737 = vmatpush1.bf16.msra.mxu0 0
        %738 = vmatprep.subr.bf16.mxu0 0
        %739 = vmatpush1.bf16.msra.mxu0 0
        %740 = vmatprep.subr.bf16.mxu0 0
        %741 = vmatpush1.bf16.msra.mxu0 0
        %742 = vmatprep.subr.bf16.mxu0 0
        %743 = vmatpush1.bf16.msra.mxu0 0
        %744 = vmatprep.subr.bf16.mxu0 0
        %745 = vmatpush1.bf16.msra.mxu0 0
        %746 = vmatprep.subr.bf16.mxu0 0
        %747 = vmatpush1.bf16.msra.mxu0 0
        %748 = vmatprep.subr.bf16.mxu0 0
        %749 = vmatpush1.bf16.msra.mxu0 0
        %750 = vmatprep.mubr.bf16.mxu0 0
        %751 = vmatmul.mubr.bf16.gmra.mrb[0].mxu0 %v646
        %v752 = vpop.f32.mrb[0].mxu0
        %v753 = vadd.f32 %v668, %v752
        %v754 = vpop.f32.mrb[0].mxu0
        %v755 = vpop.f32.mrb[0].mxu0
        %v756 = vadd.f32 %v668, %v755
        %v757 = vpop.f32.mrb[0].mxu0
        %758 = vdwg.mxu0
        %v759 = vmax.f32 %v753, 0.0
        %v760 = vmax.f32 %v756, 0.0
        %v761 = vpack.c.bf16 %v760, %v759
        %v762 = vld [vmem:[%s7] sm:$0xf]
        %v763 = vld [vmem:[%s7 + $0x4] sm:$0xf]
        %v764 = vld [vmem:[%s7 + $0x8] sm:$0xf]
        %v765 = vld [vmem:[%s7 + $0xc] sm:$0xf]
        %v766 = vld [vmem:[%s7 + $0x10] sm:$0xf]
        %v767 = vld [vmem:[%s7 + $0x14] sm:$0xf]
        %v768 = vld [vmem:[%s7 + $0x18] sm:$0xf]
        %v769 = vld [vmem:[%s7 + $0x1c] sm:$0xf]
        %v770 = vld [vmem:[%s7 + $0x20] sm:$0xf]
        %v771 = vld [vmem:[%s7 + $0x24] sm:$0xf]
        %v772 = vld [vmem:[%s7 + $0x28] sm:$0xf]
        %v773 = vld [vmem:[%s7 + $0x2c] sm:$0xf]
        %v774 = vld [vmem:[%s7 + $0x30] sm:$0xf]
        %v775 = vld [vmem:[%s7 + $0x34] sm:$0xf]
        %v776 = vld [vmem:[%s7 + $0x38] sm:$0xf]
        %v777 = vld [vmem:[%s7 + $0x3c] sm:$0xf]
        %v778 = vld [vmem:[%s8] sm:$0x1]
        %v780 = vlaneseq
        %v781 = vshrl.u32 %v780, 7
        %v782 = vsub.s32 0, %v781
        %v783 = vrot.slane %v778, %v782
        %v801 = vunpack.c.l.b16 %v762
        %v802 = vunpack.c.l.b16 %v763
        %v803 = vunpack.c.l.b16 %v764
        %v804 = vunpack.c.l.b16 %v765
        %v805 = vunpack.c.l.b16 %v766
        %v806 = vunpack.c.l.b16 %v767
        %v807 = vunpack.c.l.b16 %v768
        %v808 = vunpack.c.l.b16 %v769
        %v809 = vunpack.c.l.b16 %v770
        %v810 = vunpack.c.l.b16 %v771
        %v811 = vunpack.c.l.b16 %v772
        %v812 = vunpack.c.l.b16 %v773
        %v813 = vunpack.c.l.b16 %v774
        %v814 = vunpack.c.l.b16 %v775
        %v815 = vunpack.c.l.b16 %v776
        %v816 = vunpack.c.l.b16 %v777
        %v817 = vpack.c.b16 %v802, %v801
        %v818 = vpack.c.b16 %v804, %v803
        %v819 = vpack.c.b16 %v806, %v805
        %v820 = vpack.c.b16 %v808, %v807
        %v821 = vpack.c.b16 %v810, %v809
        %v822 = vpack.c.b16 %v812, %v811
        %v823 = vpack.c.b16 %v814, %v813
        %v824 = vpack.c.b16 %v816, %v815
        %833 = vmatprep.subr.bf16.mxu0 0
        %834 = vmatpush1.bf16.msra.mxu0 %v817
        %835 = vmatprep.subr.bf16.mxu0 0
        %836 = vmatpush1.bf16.msra.mxu0 %v818
        %837 = vmatprep.subr.bf16.mxu0 0
        %838 = vmatpush1.bf16.msra.mxu0 %v819
        %839 = vmatprep.subr.bf16.mxu0 0
        %840 = vmatpush1.bf16.msra.mxu0 %v820
        %841 = vmatprep.subr.bf16.mxu0 0
        %842 = vmatpush1.bf16.msra.mxu0 %v821
        %843 = vmatprep.subr.bf16.mxu0 0
        %844 = vmatpush1.bf16.msra.mxu0 %v822
        %845 = vmatprep.subr.bf16.mxu0 0
        %846 = vmatpush1.bf16.msra.mxu0 %v823
        %847 = vmatprep.subr.bf16.mxu0 0
        %848 = vmatpush1.bf16.msra.mxu0 %v824
        %849 = vmatprep.subr.bf16.mxu0 0
        %850 = vmatpush1.bf16.msra.mxu0 0
        %851 = vmatprep.subr.bf16.mxu0 0
        %852 = vmatpush1.bf16.msra.mxu0 0
        %853 = vmatprep.subr.bf16.mxu0 0
        %854 = vmatpush1.bf16.msra.mxu0 0
        %855 = vmatprep.subr.bf16.mxu0 0
        %856 = vmatpush1.bf16.msra.mxu0 0
        %857 = vmatprep.subr.bf16.mxu0 0
        %858 = vmatpush1.bf16.msra.mxu0 0
        %859 = vmatprep.subr.bf16.mxu0 0
        %860 = vmatpush1.bf16.msra.mxu0 0
        %861 = vmatprep.subr.bf16.mxu0 0
        %862 = vmatpush1.bf16.msra.mxu0 0
        %863 = vmatprep.subr.bf16.mxu0 0
        %864 = vmatpush1.bf16.msra.mxu0 0
        %865 = vmatprep.mubr.bf16.mxu0 0
        %866 = vmatmul.mubr.bf16.gmra.mrb[0].mxu0 %v761
        %v867 = vpop.f32.mrb[0].mxu0
        %v868 = vadd.f32 %v783, %v867
        %v869 = vpop.f32.mrb[0].mxu0
        %v870 = vpop.f32.mrb[0].mxu0
        %v871 = vadd.f32 %v783, %v870
        %v872 = vpop.f32.mrb[0].mxu0
        %873 = vdwg.mxu0
        %v874 = vmax.f32 %v868, 0.0
        %v875 = vmax.f32 %v871, 0.0
        %v876 = vpack.c.bf16 %v875, %v874
        %v877 = vld [vmem:[#allocation11] sm:$0xf]
        %v878 = vld [vmem:[#allocation11 + $0x4] sm:$0xf]
        %v879 = vld [vmem:[#allocation11 + $0x8] sm:$0xf]
        %v880 = vld [vmem:[#allocation11 + $0xc] sm:$0xf]
        %v881 = vld [vmem:[#allocation11 + $0x10] sm:$0xf]
        %v882 = vld [vmem:[#allocation11 + $0x14] sm:$0xf]
        %v883 = vld [vmem:[#allocation11 + $0x18] sm:$0xf]
        %v884 = vld [vmem:[#allocation11 + $0x1c] sm:$0xf]
        %v885 = vld [vmem:[#allocation11 + $0x20] sm:$0xf]
        %v886 = vld [vmem:[#allocation11 + $0x24] sm:$0xf]
        %v887 = vld [vmem:[#allocation11 + $0x28] sm:$0xf]
        %v888 = vld [vmem:[#allocation11 + $0x2c] sm:$0xf]
        %v889 = vld [vmem:[#allocation11 + $0x30] sm:$0xf]
        %v890 = vld [vmem:[#allocation11 + $0x34] sm:$0xf]
        %v891 = vld [vmem:[#allocation11 + $0x38] sm:$0xf]
        %v892 = vld [vmem:[#allocation11 + $0x3c] sm:$0xf]
        %v893 = vld [vmem:[%s10] sm:$0x1]
        %v895 = vlaneseq
        %v896 = vshrl.u32 %v895, 7
        %v897 = vsub.s32 0, %v896
        %v898 = vrot.slane %v893, %v897
        %v916 = vunpack.c.l.b16 %v877
        %v917 = vunpack.c.l.b16 %v878
        %v918 = vunpack.c.l.b16 %v879
        %v919 = vunpack.c.l.b16 %v880
        %v920 = vunpack.c.l.b16 %v881
        %v921 = vunpack.c.l.b16 %v882
        %v922 = vunpack.c.l.b16 %v883
        %v923 = vunpack.c.l.b16 %v884
        %v924 = vunpack.c.l.b16 %v885
        %v925 = vunpack.c.l.b16 %v886
        %v926 = vunpack.c.l.b16 %v887
        %v927 = vunpack.c.l.b16 %v888
        %v928 = vunpack.c.l.b16 %v889
        %v929 = vunpack.c.l.b16 %v890
        %v930 = vunpack.c.l.b16 %v891
        %v931 = vunpack.c.l.b16 %v892
        %v932 = vpack.c.b16 %v917, %v916
        %v933 = vpack.c.b16 %v919, %v918
        %v934 = vpack.c.b16 %v921, %v920
        %v935 = vpack.c.b16 %v923, %v922
        %v936 = vpack.c.b16 %v925, %v924
        %v937 = vpack.c.b16 %v927, %v926
        %v938 = vpack.c.b16 %v929, %v928
        %v939 = vpack.c.b16 %v931, %v930
        %948 = vmatprep.subr.bf16.mxu0 0
        %949 = vmatpush1.bf16.msra.mxu0 %v932
        %950 = vmatprep.subr.bf16.mxu0 0
        %951 = vmatpush1.bf16.msra.mxu0 %v933
        %952 = vmatprep.subr.bf16.mxu0 0
        %953 = vmatpush1.bf16.msra.mxu0 %v934
        %954 = vmatprep.subr.bf16.mxu0 0
        %955 = vmatpush1.bf16.msra.mxu0 %v935
        %956 = vmatprep.subr.bf16.mxu0 0
        %957 = vmatpush1.bf16.msra.mxu0 %v936
        %958 = vmatprep.subr.bf16.mxu0 0
        %959 = vmatpush1.bf16.msra.mxu0 %v937
        %960 = vmatprep.subr.bf16.mxu0 0
        %961 = vmatpush1.bf16.msra.mxu0 %v938
        %962 = vmatprep.subr.bf16.mxu0 0
        %963 = vmatpush1.bf16.msra.mxu0 %v939
        %964 = vmatprep.subr.bf16.mxu0 0
        %965 = vmatpush1.bf16.msra.mxu0 0
        %966 = vmatprep.subr.bf16.mxu0 0
        %967 = vmatpush1.bf16.msra.mxu0 0
        %968 = vmatprep.subr.bf16.mxu0 0
        %969 = vmatpush1.bf16.msra.mxu0 0
        %970 = vmatprep.subr.bf16.mxu0 0
        %971 = vmatpush1.bf16.msra.mxu0 0
        %972 = vmatprep.subr.bf16.mxu0 0
        %973 = vmatpush1.bf16.msra.mxu0 0
        %974 = vmatprep.subr.bf16.mxu0 0
        %975 = vmatpush1.bf16.msra.mxu0 0
        %976 = vmatprep.subr.bf16.mxu0 0
        %977 = vmatpush1.bf16.msra.mxu0 0
        %978 = vmatprep.subr.bf16.mxu0 0
        %979 = vmatpush1.bf16.msra.mxu0 0
        %980 = vmatprep.mubr.bf16.mxu0 0
        %981 = vmatmul.mubr.bf16.gmra.mrb[0].mxu0 %v876
        %v982 = vpop.f32.mrb[0].mxu0
        %v983 = vadd.f32 %v898, %v982
        %v984 = vpop.f32.mrb[0].mxu0
        %v985 = vpop.f32.mrb[0].mxu0
        %v986 = vadd.f32 %v898, %v985
        %v987 = vpop.f32.mrb[0].mxu0
        %988 = vdwg.mxu0
        %v989 = vmax.f32 %v983, 0.0
        %v990 = vmax.f32 %v986, 0.0
        %v991 = vmax.f32 %v989, %v990
        %v992 = vrot.slane %v991, 4
        %v993 = vmax.f32 %v991, %v992
        %v994 = vrot.slane %v993, 2
        %v995 = vmax.f32 %v993, %v994
        %v996 = vrot.slane %v995, 1
        %v997 = vmax.f32 %v995, %v996
        %998 = vst [vmem:[%s461] sm:$0x1] %v997
        %s999 = sand.u32 %s273, 1
        %s1000 = scalar_lea.sflag [#allocation4], %s999
        %s1001 = sand.u32 %s273, 1
        %s1002 = scalar_lea.vmem [#allocation13], %s1001
        // Predicated region
        $region89: #{pointnet_forward.1} parent=63 // pred_check
          %p1003 = pneg %p283
        $region90: #{pointnet_forward.1} parent=63 // pred_check_branch
          %1005 = sbr.rel (%p1003) target = $region92
        $region91: #{pointnet_forward.1} parent=63 // pred_region
          %s1007 = ssub.s32 16, 16
          %1008 = vsyncadd %s1000, %s1007
          %s1009 = smul.addr %s29, 16
          %s1010 = scalar_lea.hbm %s11, %s1009
          %s1012 = sshll.u32 %s1002, 4
          %s1013 = int_to_ptr.vmem [resolvable:$true] %s1012
          %1015 = dma.vmem_to_hbm [thread:$0]  %s1013, 16, %s1010, %s1000
        $region92: #{pointnet_forward.1} parent=63 // pred_fallthru
          _
      $region64: #{pointnet_forward.1} parent=5 // pred_fallthru
        _
      %p1016 = scmp.le.s32.totalorder 2, %s24
      // Predicated region
      $region93: #{pointnet_forward.1} parent=5 // pred_check
        %p1017 = pneg %p1016
      $region94: #{pointnet_forward.1} parent=5 // pred_check_branch
        %1019 = sbr.rel (%p1017) target = $region96
      $region95: #{pointnet_forward.1} parent=5 // pred_region
        %s1020 = ssub.s32 %s24, 2
        // Predicated region
        $region97: #{pointnet_forward.1} parent=95 // pred_check
          %p1021 = pneg %p289
        $region98: #{pointnet_forward.1} parent=95 // pred_check_branch
          %1023 = sbr.rel (%p1021) target = $region100
        $region99: #{pointnet_forward.1} parent=95 // pred_region
          %s1024 = sand.u32 %s274, 1
          %s1025 = scalar_lea.sflag [#allocation4], %s1024
          %s1026 = sand.u32 %s274, 1
          %s1027 = scalar_lea.vmem [#allocation13], %s1026
          %1028 = dma.done %s1025, 16
        $region100: #{pointnet_forward.1} parent=95 // pred_fallthru
          _
      $region96: #{pointnet_forward.1} parent=5 // pred_fallthru
        _
    $region6: #{pointnet_forward.1} parent=1 // loop_footer
      %s28 = sadd.s32 1, %s24
    $region7: #{pointnet_forward.1} parent=1 // loop_footer_branch
      %23 = sbr.rel target = $region3
    $region8: #{pointnet_forward.1} parent=1 // loop_exit
      _
    %1029 = vsyncpa [#allocation3], 1
    %s1030 = scalar_lea.sflag [#allocation3], 1
    %1031 = vsyncpa %s1030, 1
    %1032 = vsyncpa [#allocation6], 1
    %1033 = vsyncpa [#allocation9], 1
    %1034 = vsyncpa [#allocation12], 1
    %1035 = vsyncpa [#allocation4], 1
    %s1036 = scalar_lea.sflag [#allocation4], 1
    %1037 = vsyncpa %s1036, 1

</llo_original>
